<compile_context>
chip_gen: v7x
topology: tpu7x:2x2x1
jax: 0.10.0
libtpu: 0.0.40
codegen_flags: <defaults>
</compile_context>

<pallas_src>
import functools

import jax
import jax.numpy as jnp
import numpy as np
from jax.experimental import pallas as pl
from jax.experimental.pallas import tpu as pltpu


def _round_up(x, m):
    return ((x + m - 1) // m) * m


# ----------------------------------------------------------------------------
# Pallas kernel: both Q heads in one pass over a batch tile.
#   state_ref  : [TILE_B, D_s1]      (state with tau already appended)
#   action_ref : [TILE_B, D_a]
#   wb12_ref   : [R12, C]  packed {W1_state, W1_action, b1, W2_blockdiag, b2}
#   wb3_ref    : [R3, 2]   packed {W3_blockdiag, b3}
#   q_ref      : [TILE_B, 2]  (col 0 = q1, col 1 = q2)
# ----------------------------------------------------------------------------
def _q_critic_kernel(state_ref, action_ref, wb12_ref, wb3_ref, q_ref, *,
                     d_s1, d_a, h1, h2,
                     off_w1a, off_b1, off_w2, off_b2, off_b3):
    n1 = 2 * h1
    n2 = 2 * h2

    st = state_ref[...]                                   # [TB, d_s1]
    ac = action_ref[...]                                  # [TB, d_a]

    # Static, 8-row-aligned slices into the packed parameter slabs.
    w1s = wb12_ref[0:d_s1, 0:n1]                          # [d_s1, 2*h1]
    w1a = wb12_ref[off_w1a:off_w1a + d_a, 0:n1]           # [d_a,  2*h1]
    b1 = wb12_ref[off_b1:off_b1 + 1, 0:n1]                # [1,    2*h1]
    w2 = wb12_ref[off_w2:off_w2 + n1, 0:n2]               # [2*h1, 2*h2]
    b2 = wb12_ref[off_b2:off_b2 + 1, 0:n2]                # [1,    2*h2]
    w3 = wb3_ref[0:n2, :]                                 # [2*h2, 2]
    b3 = wb3_ref[off_b3:off_b3 + 1, :]                    # [1,    2]

    # Layer 1 (fused heads), concat-free: sa @ W1 == st @ W1[:Ds] + ac @ W1[Ds:]
    h = (jnp.dot(st, w1s, preferred_element_type=jnp.float32)
         + jnp.dot(ac, w1a, preferred_element_type=jnp.float32)
         + b1)
    h = jnp.maximum(h, 0.0)                               # ReLU

    # Layer 2 (block-diagonal keeps the two heads independent).
    h = jnp.dot(h, w2, preferred_element_type=jnp.float32) + b2
    h = jnp.maximum(h, 0.0)                               # ReLU

    # Layer 3 -> [TB, 2]  (Identity output activation)
    q_ref[...] = jnp.dot(h, w3, preferred_element_type=jnp.float32) + b3


# ----------------------------------------------------------------------------
# Host-side parameter packing (done once, outside the kernel).
# Weights are stored [in_features, out_features] (transposed vs. nn.Linear).
# ----------------------------------------------------------------------------
def pack_q_critic_params(params, d_s1, d_a, hid_shape):
    h1, h2 = hid_shape
    (w1a_, b1a_, w2a_, b2a_, w3a_, b3a_,
     w1b_, b1b_, w2b_, b2b_, w3b_, b3b_) = [jnp.asarray(p, jnp.float32)
                                            for p in params]

    n1, n2 = 2 * h1, 2 * h2
    C = max(n1, n2)

    w1_cat = jnp.concatenate([w1a_, w1b_], axis=1)                 # [d_in, n1]
    b1_cat = jnp.concatenate([b1a_, b1b_], axis=1)                 # [1, n1]
    z12 = jnp.zeros((h1, h2), jnp.float32)
    w2_bd = jnp.concatenate(
        [jnp.concatenate([w2a_, z12], axis=1),
         jnp.concatenate([z12, w2b_], axis=1)], axis=0)            # [n1, n2]
    b2_cat = jnp.concatenate([b2a_, b2b_], axis=1)                 # [1, n2]
    z31 = jnp.zeros((h2, 1), jnp.float32)
    w3_bd = jnp.concatenate(
        [jnp.concatenate([w3a_, z31], axis=1),
         jnp.concatenate([z31, w3b_], axis=1)], axis=0)            # [n2, 2]
    b3_cat = jnp.concatenate([b3a_, b3b_], axis=1)                 # [1, 2]

    def pad_block(x, rows, cols):
        return jnp.pad(x, ((0, rows - x.shape[0]), (0, cols - x.shape[1])))

    rs = _round_up(d_s1, 8)
    ra = _round_up(d_a, 8)
    r2 = _round_up(n1, 8)
    off_w1a = rs
    off_b1 = rs + ra
    off_w2 = off_b1 + 8
    off_b2 = off_w2 + r2

    wb12 = jnp.concatenate([
        pad_block(w1_cat[:d_s1], rs, C),      # rows [0, rs)          : W1 state part
        pad_block(w1_cat[d_s1:], ra, C),      # rows [off_w1a, +ra)   : W1 action part
        pad_block(b1_cat, 8, C),              # row  off_b1           : b1
        pad_block(w2_bd, r2, C),              # rows [off_w2, +r2)    : W2 blockdiag
        pad_block(b2_cat, 8, C),              # row  off_b2           : b2
    ], axis=0)

    r3 = _round_up(n2, 8)
    off_b3 = r3
    wb3 = jnp.concatenate([
        pad_block(w3_bd, r3, 2),              # rows [0, r3)          : W3 blockdiag
        pad_block(b3_cat, 8, 2),              # row  off_b3           : b3
    ], axis=0)

    offsets = dict(off_w1a=off_w1a, off_b1=off_b1, off_w2=off_w2,
                   off_b2=off_b2, off_b3=off_b3)
    return wb12, wb3, offsets


# ----------------------------------------------------------------------------
# Forward wrapper: batch-tiled grid, weights broadcast to every tile.
# ----------------------------------------------------------------------------
def q_critic_forward(state, action, packed, offsets, hid_shape):
    state = state.astype(jnp.float32)
    action = action.astype(jnp.float32)
    wb12, wb3 = packed
    h1, h2 = hid_shape
    batch, d_s1 = state.shape
    d_a = action.shape[1]

    # One block for small batches; 128-row tiles (8-aligned) for large ones.
    tile_b = batch if batch <= 512 else 128
    grid = (pl.cdiv(batch, tile_b),)

    kernel = functools.partial(_q_critic_kernel, d_s1=d_s1, d_a=d_a,
                               h1=h1, h2=h2, **offsets)

    q = pl.pallas_call(
        kernel,
        out_shape=jax.ShapeDtypeStruct((batch, 2), jnp.float32),
        grid_spec=pltpu.PrefetchScalarGridSpec(
            num_scalar_prefetch=0,
            grid=grid,
            in_specs=[
                pl.BlockSpec((tile_b, d_s1), lambda i: (i, 0)),
                pl.BlockSpec((tile_b, d_a), lambda i: (i, 0)),
                pl.BlockSpec(wb12.shape, lambda i: (0, 0)),   # resident weights
                pl.BlockSpec(wb3.shape, lambda i: (0, 0)),    # resident weights
            ],
            out_specs=pl.BlockSpec((tile_b, 2), lambda i: (i, 0)),
        ),
        compiler_params=pltpu.CompilerParams(
            dimension_semantics=("parallel",)),
    )(state, action, wb12, wb3)

    return q[:, 0:1], q[:, 1:2]


# ----------------------------------------------------------------------------
# Deterministic parameter init mimicking torch.nn.Linear default
# (uniform(-1/sqrt(fan_in), 1/sqrt(fan_in)) for weight and bias).
# Weights produced directly in [in, out] layout.
# ----------------------------------------------------------------------------
def init_linear(key, fan_in, fan_out):
    kw, kb = jax.random.split(key)
    bound = 1.0 / np.sqrt(fan_in)
    w = jax.random.uniform(kw, (fan_in, fan_out), jnp.float32, -bound, bound)
    b = jax.random.uniform(kb, (1, fan_out), jnp.float32, -bound, bound)
    return w, b


def init_q_critic(key, state_dim, action_dim, hid_shape):
    layer_sizes = [state_dim + action_dim + 1] + list(hid_shape) + [1]
    params = []
    for _head in range(2):
        for j in range(len(layer_sizes) - 1):
            key, sub = jax.random.split(key)
            w, b = init_linear(sub, layer_sizes[j], layer_sizes[j + 1])
            params.extend([w, b])
    return tuple(params)


# Pure-JAX reference for correctness checking (unfused twin-head MLP).
def q_critic_reference(state, action, params):
    sa = jnp.concatenate([state, action], axis=1).astype(jnp.float32)
    (w1a, b1a, w2a, b2a, w3a, b3a,
     w1b, b1b, w2b, b2b, w3b, b3b) = params

    def head(w1, b1, w2, b2, w3, b3):
        h = jnp.maximum(sa @ w1 + b1, 0.0)
        h = jnp.maximum(h @ w2 + b2, 0.0)
        return h @ w3 + b3

    return (head(w1a, b1a, w2a, b2a, w3a, b3a),
            head(w1b, b1b, w2b, b2b, w3b, b3b))


if __name__ == "__main__":
    # Small, deterministic example consistent with the module:
    #   state_dim=8, action_dim=3, hid_shape=(32, 32)
    #   critic input dim = state_dim + action_dim + 1 = 12
    #   -> state passed in already has tau appended: shape (B, state_dim + 1)
    state_dim, action_dim = 8, 3
    hid_shape = (32, 32)
    batch = 8

    key = jax.random.PRNGKey(0)
    kp, ks, ka = jax.random.split(key, 3)

    params = init_q_critic(kp, state_dim, action_dim, hid_shape)
    state = jax.random.normal(ks, (batch, state_dim + 1), jnp.float32)
    action = jax.random.normal(ka, (batch, action_dim), jnp.float32)

    wb12, wb3, offsets = pack_q_critic_params(
        params, state_dim + 1, action_dim, hid_shape)

    q1, q2 = q_critic_forward(state, action, (wb12, wb3), offsets, hid_shape)
    jax.block_until_ready((q1, q2))

    r1, r2 = q_critic_reference(state, action, params)
    np.testing.assert_allclose(np.asarray(q1), np.asarray(r1), rtol=1e-5, atol=1e-5)
    np.testing.assert_allclose(np.asarray(q2), np.asarray(r2), rtol=1e-5, atol=1e-5)

    print("KERNEL_OK")
</pallas_src>

<mosaic_0001>
module attributes {stable_mosaic.version = 11 : i64} {
  func.func @_q_critic_kernel(%arg0: i32, %arg1: memref<8x9xf32, #tpu.memory_space<vmem>>, %arg2: memref<8x3xf32, #tpu.memory_space<vmem>>, %arg3: memref<104x64xf32, #tpu.memory_space<vmem>>, %arg4: memref<72x2xf32, #tpu.memory_space<vmem>>, %arg5: memref<8x2xf32, #tpu.memory_space<vmem>>) attributes {dimension_semantics = [#tpu.dimension_semantics<parallel>], iteration_bounds = array<i64: 1>, scalar_prefetch = 0 : i64, scratch_operands = 0 : i64, tpu.core_type = #tpu.core_type<tc>, window_params = [{transform_indices = @transform_0, window_bounds = array<i64: 8, 9>}, {transform_indices = @transform_1, window_bounds = array<i64: 8, 3>}, {pipeline_mode = #tpu.pipeline_mode<synchronous>, transform_indices = @transform_2, window_bounds = array<i64: 104, 64>}, {pipeline_mode = #tpu.pipeline_mode<synchronous>, transform_indices = @transform_3, window_bounds = array<i64: 72, 2>}, {transform_indices = @transform_4, window_bounds = array<i64: 8, 2>}]} {
    %c0 = arith.constant 0 : index
    %c0_0 = arith.constant 0 : index
    %0 = vector.load %arg1[%c0, %c0_0] : memref<8x9xf32, #tpu.memory_space<vmem>>, vector<8x9xf32>
    %c0_1 = arith.constant 0 : index
    %c0_2 = arith.constant 0 : index
    %1 = vector.load %arg2[%c0_1, %c0_2] : memref<8x3xf32, #tpu.memory_space<vmem>>, vector<8x3xf32>
    %c0_3 = arith.constant 0 : index
    %c0_4 = arith.constant 0 : index
    %2 = vector.load %arg3[%c0_3, %c0_4] : memref<104x64xf32, #tpu.memory_space<vmem>>, vector<9x64xf32>
    %c16 = arith.constant 16 : index
    %c0_5 = arith.constant 0 : index
    %3 = vector.load %arg3[%c16, %c0_5] : memref<104x64xf32, #tpu.memory_space<vmem>>, vector<3x64xf32>
    %c24 = arith.constant 24 : index
    %c0_6 = arith.constant 0 : index
    %4 = vector.load %arg3[%c24, %c0_6] : memref<104x64xf32, #tpu.memory_space<vmem>>, vector<1x64xf32>
    %c32 = arith.constant 32 : index
    %c0_7 = arith.constant 0 : index
    %5 = vector.load %arg3[%c32, %c0_7] : memref<104x64xf32, #tpu.memory_space<vmem>>, vector<64x64xf32>
    %c96 = arith.constant 96 : index
    %c0_8 = arith.constant 0 : index
    %6 = vector.load %arg3[%c96, %c0_8] : memref<104x64xf32, #tpu.memory_space<vmem>>, vector<1x64xf32>
    %c0_9 = arith.constant 0 : index
    %c0_10 = arith.constant 0 : index
    %7 = vector.load %arg4[%c0_9, %c0_10] : memref<72x2xf32, #tpu.memory_space<vmem>>, vector<64x2xf32>
    %c64 = arith.constant 64 : index
    %c0_11 = arith.constant 0 : index
    %8 = vector.load %arg4[%c64, %c0_11] : memref<72x2xf32, #tpu.memory_space<vmem>>, vector<1x2xf32>
    %cst = arith.constant dense<0.000000e+00> : vector<8x64xf32>
    %9 = tpu.matmul %0, %2, %cst {dimension_numbers = #tpu.dot_dimension_numbers<[1], [0], [0], [1], [0, 0, 1, 1], [], []>} : vector<8x9xf32>, vector<9x64xf32>, vector<8x64xf32> -> vector<8x64xf32>
    %cst_12 = arith.constant dense<0.000000e+00> : vector<8x64xf32>
    %10 = tpu.matmul %1, %3, %cst_12 {dimension_numbers = #tpu.dot_dimension_numbers<[1], [0], [0], [1], [0, 0, 1, 1], [], []>} : vector<8x3xf32>, vector<3x64xf32>, vector<8x64xf32> -> vector<8x64xf32>
    %11 = arith.addf %9, %10 : vector<8x64xf32>
    %12 = vector.broadcast %4 : vector<1x64xf32> to vector<8x64xf32>
    %13 = arith.addf %11, %12 : vector<8x64xf32>
    %cst_13 = arith.constant 0.000000e+00 : f32
    %14 = vector.broadcast %cst_13 : f32 to vector<8x64xf32>
    %15 = arith.maximumf %13, %14 : vector<8x64xf32>
    %cst_14 = arith.constant dense<0.000000e+00> : vector<8x64xf32>
    %16 = tpu.matmul %15, %5, %cst_14 {dimension_numbers = #tpu.dot_dimension_numbers<[1], [0], [0], [1], [0, 0, 1, 1], [], []>} : vector<8x64xf32>, vector<64x64xf32>, vector<8x64xf32> -> vector<8x64xf32>
    %17 = vector.broadcast %6 : vector<1x64xf32> to vector<8x64xf32>
    %18 = arith.addf %16, %17 : vector<8x64xf32>
    %cst_15 = arith.constant 0.000000e+00 : f32
    %19 = vector.broadcast %cst_15 : f32 to vector<8x64xf32>
    %20 = arith.maximumf %18, %19 : vector<8x64xf32>
    %cst_16 = arith.constant dense<0.000000e+00> : vector<8x2xf32>
    %21 = tpu.matmul %20, %7, %cst_16 {dimension_numbers = #tpu.dot_dimension_numbers<[1], [0], [0], [1], [0, 0, 1, 1], [], []>} : vector<8x64xf32>, vector<64x2xf32>, vector<8x2xf32> -> vector<8x2xf32>
    %22 = vector.broadcast %8 : vector<1x2xf32> to vector<8x2xf32>
    %23 = arith.addf %21, %22 : vector<8x2xf32>
    %c0_17 = arith.constant 0 : index
    %c0_18 = arith.constant 0 : index
    %24 = vector.load %arg5[%c0_17, %c0_18] : memref<8x2xf32, #tpu.memory_space<vmem>>, vector<8x2xf32>
    tpu.vector_store %arg5[%c0_17, %c0_18], %23 {strides = array<i32>} : memref<8x2xf32, #tpu.memory_space<vmem>>, vector<8x2xf32>,
    return
  }
  func.func @transform_0(%arg0: i32) -> (i32, i32) {
    %c0_i32 = arith.constant 0 : i32
    %c0_i32_0 = arith.constant 0 : i32
    return %arg0, %c0_i32 : i32, i32
  }
  func.func @transform_1(%arg0: i32) -> (i32, i32) {
    %c0_i32 = arith.constant 0 : i32
    %c0_i32_0 = arith.constant 0 : i32
    return %arg0, %c0_i32 : i32, i32
  }
  func.func @transform_2(%arg0: i32) -> (i32, i32) {
    %c0_i32 = arith.constant 0 : i32
    %c0_i32_0 = arith.constant 0 : i32
    %c0_i32_1 = arith.constant 0 : i32
    return %c0_i32, %c0_i32_0 : i32, i32
  }
  func.func @transform_3(%arg0: i32) -> (i32, i32) {
    %c0_i32 = arith.constant 0 : i32
    %c0_i32_0 = arith.constant 0 : i32
    %c0_i32_1 = arith.constant 0 : i32
    return %c0_i32, %c0_i32_0 : i32, i32
  }
  func.func @transform_4(%arg0: i32) -> (i32, i32) {
    %c0_i32 = arith.constant 0 : i32
    %c0_i32_0 = arith.constant 0 : i32
    return %arg0, %c0_i32 : i32, i32
  }
}

</mosaic_0001>

<llo_original>
// kernel: tpu_custom_call.1
$region0: #{tpu_custom_call.1}
  #allocation0 [shape = 'u32[]', space=smem, size = 0x4, offset = 0x4, fixed_abs, tag = 'smem constant byte address 0x4 - core index']
  #allocation1 [shape = 'u32[144,128]{1,0:T(1,128)}', space=vmem, size = 0x12000, scoped, tag = 'internal scratch']
  %s0 = inlined_call_operand.vmem [shape: f32[8,9], index: 0, kind: input, shape index: {}]
  %s1 = inlined_call_operand.vmem [shape: f32[8,3], index: 1, kind: input, shape index: {}]
  %s2 = inlined_call_operand.vmem [shape: f32[104,64], index: 2, kind: input, shape index: {}]
  %s3 = inlined_call_operand.vmem [shape: f32[72,2], index: 3, kind: input, shape index: {}]
  %s4 = inlined_call_operand.vmem [shape: f32[8,2], index: 4, kind: output, shape index: {}]
  %s5 = sld [smem:[#allocation0]]
  $region26: #{tpu_custom_call.1} parent=0
    _
  %s7 = ssub.s32 1, %s5
  %s8 = scalar_select 0, %s7, %s5
  // Predicated region
  $region2: #{tpu_custom_call.1} parent=0 // pred_check
    _
  $region3: #{tpu_custom_call.1} parent=0 // pred_check_branch
    %10 = sbr.rel (0) target = $region5
  $region4: #{tpu_custom_call.1} parent=0 // pred_region
    _
  $region5: #{tpu_custom_call.1} parent=0 // pred_fallthru
    _
  // Predicated region
  $region6: #{tpu_custom_call.1} parent=0 // pred_check
    _
  $region7: #{tpu_custom_call.1} parent=0 // pred_check_branch
    %12 = sbr.rel (0) target = $region9
  $region8: #{tpu_custom_call.1} parent=0 // pred_region
    _
  $region9: #{tpu_custom_call.1} parent=0 // pred_fallthru
    _
  // Predicated region
  $region10: #{tpu_custom_call.1} parent=0 // pred_check
    _
  $region11: #{tpu_custom_call.1} parent=0 // pred_check_branch
    %14 = sbr.rel (0) target = $region13
  $region12: #{tpu_custom_call.1} parent=0 // pred_region
    _
  $region13: #{tpu_custom_call.1} parent=0 // pred_fallthru
    _
  // Predicated region
  $region14: #{tpu_custom_call.1} parent=0 // pred_check
    _
  $region15: #{tpu_custom_call.1} parent=0 // pred_check_branch
    %16 = sbr.rel (0) target = $region17
  $region16: #{tpu_custom_call.1} parent=0 // pred_region
    _
  $region17: #{tpu_custom_call.1} parent=0 // pred_fallthru
    _
  %v17 = vld [vmem:[%s0] sm:$0xff]
  %v18 = vld [vmem:[%s1] sm:$0xff]
  %v19 = vld [vmem:[%s2] sm:$0xff]
  %v20 = vld [vmem:[%s2 + $0x8] sm:$0x1]
  %v21 = vld [vmem:[%s2 + $0x10] sm:$0x7]
  %v22 = vld [vmem:[%s2 + $0x18] sm:$0x1]
  %v23 = vld [vmem:[%s2 + $0x20] sm:$0xff]
  %v24 = vld [vmem:[%s2 + $0x28] sm:$0xff]
  %v25 = vld [vmem:[%s2 + $0x30] sm:$0xff]
  %v26 = vld [vmem:[%s2 + $0x38] sm:$0xff]
  %v27 = vld [vmem:[%s2 + $0x40] sm:$0xff]
  %v28 = vld [vmem:[%s2 + $0x48] sm:$0xff]
  %v29 = vld [vmem:[%s2 + $0x50] sm:$0xff]
  %v30 = vld [vmem:[%s2 + $0x58] sm:$0xff]
  %v31 = vld [vmem:[%s2 + $0x60] sm:$0x1]
  %v32 = vld [vmem:[%s3] sm:$0xff]
  %v33 = vld [vmem:[%s3 + $0x8] sm:$0xff]
  %v34 = vld [vmem:[%s3 + $0x10] sm:$0xff]
  %v35 = vld [vmem:[%s3 + $0x18] sm:$0xff]
  %v36 = vld [vmem:[%s3 + $0x20] sm:$0xff]
  %v37 = vld [vmem:[%s3 + $0x28] sm:$0xff]
  %v38 = vld [vmem:[%s3 + $0x30] sm:$0xff]
  %v39 = vld [vmem:[%s3 + $0x38] sm:$0xff]
  %v40 = vld [vmem:[%s3 + $0x40] sm:$0x1]
  %vm41 = vcmask 23552
  %v43 = vsel %vm41, %v18, 0
  %vm45 = vcmask 1042432
  %v47 = vsel %vm45, %v21, 0
  %49 = vmatprep.subr.mxu0 0.0
  %50 = vmatpush1.msra.mxu0 %v47
  %51 = vmatprep.subr.mxu0 0.0
  %52 = vmatpush1.msra.mxu0 0.0
  %53 = vmatprep.subr.mxu0 0.0
  %54 = vmatpush1.msra.mxu0 0.0
  %55 = vmatprep.subr.mxu0 0.0
  %56 = vmatpush1.msra.mxu0 0.0
  %57 = vmatprep.subr.mxu0 0.0
  %58 = vmatpush1.msra.mxu0 0.0
  %59 = vmatprep.subr.mxu0 0.0
  %60 = vmatpush1.msra.mxu0 0.0
  %61 = vmatprep.subr.mxu0 0.0
  %62 = vmatpush1.msra.mxu0 0.0
  %63 = vmatprep.subr.mxu0 0.0
  %64 = vmatpush1.msra.mxu0 0.0
  %65 = vmatprep.subr.mxu0 0.0
  %66 = vmatpush1.msra.mxu0 0.0
  %67 = vmatprep.subr.mxu0 0.0
  %68 = vmatpush1.msra.mxu0 0.0
  %69 = vmatprep.subr.mxu0 0.0
  %70 = vmatpush1.msra.mxu0 0.0
  %71 = vmatprep.subr.mxu0 0.0
  %72 = vmatpush1.msra.mxu0 0.0
  %73 = vmatprep.subr.mxu0 0.0
  %74 = vmatpush1.msra.mxu0 0.0
  %75 = vmatprep.subr.mxu0 0.0
  %76 = vmatpush1.msra.mxu0 0.0
  %77 = vmatprep.subr.mxu0 0.0
  %78 = vmatpush1.msra.mxu0 0.0
  %79 = vmatprep.subr.mxu0 0.0
  %80 = vmatpush1.msra.mxu0 0.0
  %81 = vmatprep.subr.mxu0 0.0
  %82 = vmatpush1.msra.mxu0 0.0
  %83 = vmatprep.subr.mxu0 0.0
  %84 = vmatpush1.msra.mxu0 0.0
  %85 = vmatprep.subr.mxu0 0.0
  %86 = vmatpush1.msra.mxu0 0.0
  %87 = vmatprep.subr.mxu0 0.0
  %88 = vmatpush1.msra.mxu0 0.0
  %89 = vmatprep.subr.mxu0 0.0
  %90 = vmatpush1.msra.mxu0 0.0
  %91 = vmatprep.subr.mxu0 0.0
  %92 = vmatpush1.msra.mxu0 0.0
  %93 = vmatprep.subr.mxu0 0.0
  %94 = vmatpush1.msra.mxu0 0.0
  %95 = vmatprep.subr.mxu0 0.0
  %96 = vmatpush1.msra.mxu0 0.0
  %97 = vmatprep.subr.mxu0 0.0
  %98 = vmatpush1.msra.mxu0 0.0
  %99 = vmatprep.subr.mxu0 0.0
  %100 = vmatpush1.msra.mxu0 0.0
  %101 = vmatprep.subr.mxu0 0.0
  %102 = vmatpush1.msra.mxu0 0.0
  %103 = vmatprep.subr.mxu0 0.0
  %104 = vmatpush1.msra.mxu0 0.0
  %105 = vmatprep.subr.mxu0 0.0
  %106 = vmatpush1.msra.mxu0 0.0
  %107 = vmatprep.subr.mxu0 0.0
  %108 = vmatpush1.msra.mxu0 0.0
  %109 = vmatprep.subr.mxu0 0.0
  %110 = vmatpush1.msra.mxu0 0.0
  %111 = vmatprep.subr.mxu0 0.0
  %112 = vmatpush1.msra.mxu0 0.0
  %113 = vmatprep.mubr.f32.mxu0 0.0
  %114 = vmatmul.mubr.f32.gmra.mrb[0].mxu0 %v43
  %v115 = vpop.f32.mrb[0].mxu0
  %v116 = vadd.f32 0.0, %v115
  %v117 = vpop.f32.mrb[0].mxu0
  %118 = vdwg.mxu0
  %vm119 = vcmask 72704
  %v121 = vsel %vm119, %v17, 0
  %vm123 = vcmask 1040384
  %v125 = vsel %vm123, %v20, 0
  %127 = vmatprep.subr.mxu0 0.0
  %128 = vmatpush1.msra.mxu0 %v19
  %129 = vmatprep.subr.mxu0 0.0
  %130 = vmatpush1.msra.mxu0 %v125
  %131 = vmatprep.subr.mxu0 0.0
  %132 = vmatpush1.msra.mxu0 0.0
  %133 = vmatprep.subr.mxu0 0.0
  %134 = vmatpush1.msra.mxu0 0.0
  %135 = vmatprep.subr.mxu0 0.0
  %136 = vmatpush1.msra.mxu0 0.0
  %137 = vmatprep.subr.mxu0 0.0
  %138 = vmatpush1.msra.mxu0 0.0
  %139 = vmatprep.subr.mxu0 0.0
  %140 = vmatpush1.msra.mxu0 0.0
  %141 = vmatprep.subr.mxu0 0.0
  %142 = vmatpush1.msra.mxu0 0.0
  %143 = vmatprep.subr.mxu0 0.0
  %144 = vmatpush1.msra.mxu0 0.0
  %145 = vmatprep.subr.mxu0 0.0
  %146 = vmatpush1.msra.mxu0 0.0
  %147 = vmatprep.subr.mxu0 0.0
  %148 = vmatpush1.msra.mxu0 0.0
  %149 = vmatprep.subr.mxu0 0.0
  %150 = vmatpush1.msra.mxu0 0.0
  %151 = vmatprep.subr.mxu0 0.0
  %152 = vmatpush1.msra.mxu0 0.0
  %153 = vmatprep.subr.mxu0 0.0
  %154 = vmatpush1.msra.mxu0 0.0
  %155 = vmatprep.subr.mxu0 0.0
  %156 = vmatpush1.msra.mxu0 0.0
  %157 = vmatprep.subr.mxu0 0.0
  %158 = vmatpush1.msra.mxu0 0.0
  %159 = vmatprep.subr.mxu0 0.0
  %160 = vmatpush1.msra.mxu0 0.0
  %161 = vmatprep.subr.mxu0 0.0
  %162 = vmatpush1.msra.mxu0 0.0
  %163 = vmatprep.subr.mxu0 0.0
  %164 = vmatpush1.msra.mxu0 0.0
  %165 = vmatprep.subr.mxu0 0.0
  %166 = vmatpush1.msra.mxu0 0.0
  %167 = vmatprep.subr.mxu0 0.0
  %168 = vmatpush1.msra.mxu0 0.0
  %169 = vmatprep.subr.mxu0 0.0
  %170 = vmatpush1.msra.mxu0 0.0
  %171 = vmatprep.subr.mxu0 0.0
  %172 = vmatpush1.msra.mxu0 0.0
  %173 = vmatprep.subr.mxu0 0.0
  %174 = vmatpush1.msra.mxu0 0.0
  %175 = vmatprep.subr.mxu0 0.0
  %176 = vmatpush1.msra.mxu0 0.0
  %177 = vmatprep.subr.mxu0 0.0
  %178 = vmatpush1.msra.mxu0 0.0
  %179 = vmatprep.subr.mxu0 0.0
  %180 = vmatpush1.msra.mxu0 0.0
  %181 = vmatprep.subr.mxu0 0.0
  %182 = vmatpush1.msra.mxu0 0.0
  %183 = vmatprep.subr.mxu0 0.0
  %184 = vmatpush1.msra.mxu0 0.0
  %185 = vmatprep.subr.mxu0 0.0
  %186 = vmatpush1.msra.mxu0 0.0
  %187 = vmatprep.subr.mxu0 0.0
  %188 = vmatpush1.msra.mxu0 0.0
  %189 = vmatprep.subr.mxu0 0.0
  %190 = vmatpush1.msra.mxu0 0.0
  %191 = vmatprep.mubr.f32.mxu0 0.0
  %192 = vmatmul.mubr.f32.gmra.mrb[0].mxu0 %v121
  %v193 = vpop.f32.mrb[0].mxu0
  %v194 = vadd.f32 %v116, %v193
  %v195 = vpop.f32.mrb[0].mxu0
  %196 = vdwg.mxu0
  %v197 = vlaneseq
  %v198 = vshrl.u32 %v197, 7
  %v199 = vsub.s32 0, %v198
  %v200 = vrot.slane %v22, %v199
  %v201 = vadd.f32 %v194, %v200
  %v202 = vmax.f32 %v201, 0.0
  %v203 = vlaneseq
  %v204 = vshrl.u32 %v203, 7
  %v205 = vsub.s32 0, %v204
  %v206 = vrot.slane %v31, %v205
  %vm207 = vcmask 523264
  %v209 = vsel %vm207, %v202, 0
  %211 = vmatprep.subr.mxu0 0.0
  %212 = vmatpush1.msra.mxu0 %v23
  %213 = vmatprep.subr.mxu0 0.0
  %214 = vmatpush1.msra.mxu0 %v24
  %215 = vmatprep.subr.mxu0 0.0
  %216 = vmatpush1.msra.mxu0 %v25
  %217 = vmatprep.subr.mxu0 0.0
  %218 = vmatpush1.msra.mxu0 %v26
  %219 = vmatprep.subr.mxu0 0.0
  %220 = vmatpush1.msra.mxu0 %v27
  %221 = vmatprep.subr.mxu0 0.0
  %222 = vmatpush1.msra.mxu0 %v28
  %223 = vmatprep.subr.mxu0 0.0
  %224 = vmatpush1.msra.mxu0 %v29
  %225 = vmatprep.subr.mxu0 0.0
  %226 = vmatpush1.msra.mxu0 %v30
  %227 = vmatprep.subr.mxu0 0.0
  %228 = vmatpush1.msra.mxu0 0.0
  %229 = vmatprep.subr.mxu0 0.0
  %230 = vmatpush1.msra.mxu0 0.0
  %231 = vmatprep.subr.mxu0 0.0
  %232 = vmatpush1.msra.mxu0 0.0
  %233 = vmatprep.subr.mxu0 0.0
  %234 = vmatpush1.msra.mxu0 0.0
  %235 = vmatprep.subr.mxu0 0.0
  %236 = vmatpush1.msra.mxu0 0.0
  %237 = vmatprep.subr.mxu0 0.0
  %238 = vmatpush1.msra.mxu0 0.0
  %239 = vmatprep.subr.mxu0 0.0
  %240 = vmatpush1.msra.mxu0 0.0
  %241 = vmatprep.subr.mxu0 0.0
  %242 = vmatpush1.msra.mxu0 0.0
  %243 = vmatprep.subr.mxu0 0.0
  %244 = vmatpush1.msra.mxu0 0.0
  %245 = vmatprep.subr.mxu0 0.0
  %246 = vmatpush1.msra.mxu0 0.0
  %247 = vmatprep.subr.mxu0 0.0
  %248 = vmatpush1.msra.mxu0 0.0
  %249 = vmatprep.subr.mxu0 0.0
  %250 = vmatpush1.msra.mxu0 0.0
  %251 = vmatprep.subr.mxu0 0.0
  %252 = vmatpush1.msra.mxu0 0.0
  %253 = vmatprep.subr.mxu0 0.0
  %254 = vmatpush1.msra.mxu0 0.0
  %255 = vmatprep.subr.mxu0 0.0
  %256 = vmatpush1.msra.mxu0 0.0
  %257 = vmatprep.subr.mxu0 0.0
  %258 = vmatpush1.msra.mxu0 0.0
  %259 = vmatprep.subr.mxu0 0.0
  %260 = vmatpush1.msra.mxu0 0.0
  %261 = vmatprep.subr.mxu0 0.0
  %262 = vmatpush1.msra.mxu0 0.0
  %263 = vmatprep.subr.mxu0 0.0
  %264 = vmatpush1.msra.mxu0 0.0
  %265 = vmatprep.subr.mxu0 0.0
  %266 = vmatpush1.msra.mxu0 0.0
  %267 = vmatprep.subr.mxu0 0.0
  %268 = vmatpush1.msra.mxu0 0.0
  %269 = vmatprep.subr.mxu0 0.0
  %270 = vmatpush1.msra.mxu0 0.0
  %271 = vmatprep.subr.mxu0 0.0
  %272 = vmatpush1.msra.mxu0 0.0
  %273 = vmatprep.subr.mxu0 0.0
  %274 = vmatpush1.msra.mxu0 0.0
  %275 = vmatprep.mubr.f32.mxu0 0.0
  %276 = vmatmul.mubr.f32.gmra.mrb[0].mxu0 %v209
  %v277 = vpop.f32.mrb[0].mxu0
  %v278 = vadd.f32 %v206, %v277
  %v279 = vpop.f32.mrb[0].mxu0
  %280 = vdwg.mxu0
  %v281 = vmax.f32 %v278, 0.0
  %v282 = vlaneseq
  %v283 = vshrl.u32 %v282, 7
  %v284 = vsub.s32 0, %v283
  %v285 = vrot.slane %v40, %v284
  %v287 = vsel %vm207, %v281, 0
  %289 = vmatprep.subr.mxu0 0.0
  %290 = vmatpush1.msra.mxu0 %v32
  %291 = vmatprep.subr.mxu0 0.0
  %292 = vmatpush1.msra.mxu0 %v33
  %293 = vmatprep.subr.mxu0 0.0
  %294 = vmatpush1.msra.mxu0 %v34
  %295 = vmatprep.subr.mxu0 0.0
  %296 = vmatpush1.msra.mxu0 %v35
  %297 = vmatprep.subr.mxu0 0.0
  %298 = vmatpush1.msra.mxu0 %v36
  %299 = vmatprep.subr.mxu0 0.0
  %300 = vmatpush1.msra.mxu0 %v37
  %301 = vmatprep.subr.mxu0 0.0
  %302 = vmatpush1.msra.mxu0 %v38
  %303 = vmatprep.subr.mxu0 0.0
  %304 = vmatpush1.msra.mxu0 %v39
  %305 = vmatprep.subr.mxu0 0.0
  %306 = vmatpush1.msra.mxu0 0.0
  %307 = vmatprep.subr.mxu0 0.0
  %308 = vmatpush1.msra.mxu0 0.0
  %309 = vmatprep.subr.mxu0 0.0
  %310 = vmatpush1.msra.mxu0 0.0
  %311 = vmatprep.subr.mxu0 0.0
  %312 = vmatpush1.msra.mxu0 0.0
  %313 = vmatprep.subr.mxu0 0.0
  %314 = vmatpush1.msra.mxu0 0.0
  %315 = vmatprep.subr.mxu0 0.0
  %316 = vmatpush1.msra.mxu0 0.0
  %317 = vmatprep.subr.mxu0 0.0
  %318 = vmatpush1.msra.mxu0 0.0
  %319 = vmatprep.subr.mxu0 0.0
  %320 = vmatpush1.msra.mxu0 0.0
  %321 = vmatprep.subr.mxu0 0.0
  %322 = vmatpush1.msra.mxu0 0.0
  %323 = vmatprep.subr.mxu0 0.0
  %324 = vmatpush1.msra.mxu0 0.0
  %325 = vmatprep.subr.mxu0 0.0
  %326 = vmatpush1.msra.mxu0 0.0
  %327 = vmatprep.subr.mxu0 0.0
  %328 = vmatpush1.msra.mxu0 0.0
  %329 = vmatprep.subr.mxu0 0.0
  %330 = vmatpush1.msra.mxu0 0.0
  %331 = vmatprep.subr.mxu0 0.0
  %332 = vmatpush1.msra.mxu0 0.0
  %333 = vmatprep.subr.mxu0 0.0
  %334 = vmatpush1.msra.mxu0 0.0
  %335 = vmatprep.subr.mxu0 0.0
  %336 = vmatpush1.msra.mxu0 0.0
  %337 = vmatprep.subr.mxu0 0.0
  %338 = vmatpush1.msra.mxu0 0.0
  %339 = vmatprep.subr.mxu0 0.0
  %340 = vmatpush1.msra.mxu0 0.0
  %341 = vmatprep.subr.mxu0 0.0
  %342 = vmatpush1.msra.mxu0 0.0
  %343 = vmatprep.subr.mxu0 0.0
  %344 = vmatpush1.msra.mxu0 0.0
  %345 = vmatprep.subr.mxu0 0.0
  %346 = vmatpush1.msra.mxu0 0.0
  %347 = vmatprep.subr.mxu0 0.0
  %348 = vmatpush1.msra.mxu0 0.0
  %349 = vmatprep.subr.mxu0 0.0
  %350 = vmatpush1.msra.mxu0 0.0
  %351 = vmatprep.subr.mxu0 0.0
  %352 = vmatpush1.msra.mxu0 0.0
  %353 = vmatprep.mubr.f32.mxu0 0.0
  %354 = vmatmul.mubr.f32.gmra.mrb[0].mxu0 %v287
  %v355 = vpop.f32.mrb[0].mxu0
  %v356 = vadd.f32 %v285, %v355
  %v357 = vpop.f32.mrb[0].mxu0
  %358 = vdwg.mxu0
  %vm359 = vcmask 15360
  %360 = vst.msk [vmem:[%s4] sm:$0xff] %vm359, %v356
  // Predicated region
  $region18: #{tpu_custom_call.1} parent=0 // pred_check
    _
  $region19: #{tpu_custom_call.1} parent=0 // pred_check_branch
    %362 = sbr.rel (0) target = $region21
  $region20: #{tpu_custom_call.1} parent=0 // pred_region
    _
  $region21: #{tpu_custom_call.1} parent=0 // pred_fallthru
    _
  // Predicated region
  $region22: #{tpu_custom_call.1} parent=0 // pred_check
    _
  $region23: #{tpu_custom_call.1} parent=0 // pred_check_branch
    %364 = sbr.rel (0) target = $region25
  $region24: #{tpu_custom_call.1} parent=0 // pred_region
    _
  $region25: #{tpu_custom_call.1} parent=0 // pred_fallthru
    _

</llo_original>
